<compile_context>
chip_gen: v7x
topology: tpu7x:2x2x1
jax: 0.10.0
libtpu: 0.0.40
codegen_flags: <defaults>
</compile_context>

<pallas_src>
import functools
import math

import jax
import jax.numpy as jnp
from jax.experimental import pallas as pl
from jax.experimental.pallas import tpu as pltpu


def _cdiv(a, b):
    return -(-a // b)


def _round_down(x, m):
    return (x // m) * m


def _hw_budgets():
    """Returns (target input-block bytes per grid step, scoped-VMEM cap)."""
    vmem_bytes = 128 * 1024 * 1024
    try:  # host-side hardware query only; never affects kernel correctness
        info = pltpu.get_tpu_info()
        vmem_bytes = int(getattr(info, "vmem_capacity_bytes", vmem_bytes))
    except Exception:
        pass
    if vmem_bytes <= 64 * 1024 * 1024:
        # v7x-class: ~3.2 TB/s HBM but only 64 MiB VMEM.  Large (~12 MiB)
        # blocks keep the ~0.35us/step grid overhead under ~10% of the
        # roofline; cap scoped VMEM at 75% of capacity so the compiler keeps
        # headroom for its own scratch / pipeline depth.
        return 12 * 1024 * 1024, (3 * vmem_bytes) // 4
    # v5e / v6e: ~0.8-1.4 TB/s HBM, 128 MiB VMEM.  ~4 MiB blocks already sit
    # at >=85% of the HBM roofline; 32-64 MiB scoped VMEM is plenty (and
    # overrides v5e's 16 MiB scoped default).
    return 4 * 1024 * 1024, min(64 * 1024 * 1024, vmem_bytes // 2)


# ----------------------------------------------------------------------------
# Main kernel: lane-dense tiles, grouped max over every R consecutive lanes.
# ----------------------------------------------------------------------------
def _amp_block_kernel(x_ref, o_ref, *, R, out_chunk=256):
    # x_ref: (TR, L*R) input tile; o_ref: (TR, L) per-bin maxima.
    # The lane axis is processed in `out_chunk`-wide output chunks so any
    # relayout intermediate Mosaic materializes for the minor-dim reshape
    # stays a few hundred KiB instead of the whole block.
    # TODO(synk): if a v7x bundle dump shows the reshape lowering is
    # XLU/shuffle-bound, replace it with a log2(R)-step strided maximum tree.
    tr = x_ref.shape[0]
    L = o_ref.shape[1]
    oc = min(out_chunk, L)
    for lo in range(0, L, oc):
        w = min(oc, L - lo)
        xc = x_ref[:, lo * R:(lo + w) * R]
        o_ref[:, lo:lo + w] = jnp.max(xc.reshape(tr, w, R), axis=-1)


def _amp_lane_dense(flat, R, L, dtype, sub, target_block_bytes, vmem_cap):
    itemsize = jnp.dtype(dtype).itemsize
    M_total = flat.size // R
    C = L * R
    rows = M_total // L                  # exact: L divides M_total
    xr = flat.reshape(rows, C)           # contiguous reshape -> no data copy

    row_bytes = C * itemsize
    min_steps = 8
    if rows <= sub:
        TR = rows                        # one (possibly sub-tile) block
    else:
        tr_budget = max(sub, _round_down(target_block_bytes // row_bytes, sub))
        if rows >= min_steps * sub:
            # Never run a 1-2 step grid on non-tiny inputs: keep >= ~8 steps
            # so software pipelining overlaps DMA with compute and v7x can
            # shard the parallel axis across both TensorCores.
            tr_cap = max(sub, _round_down(rows // min_steps, sub))
        else:
            tr_cap = max(sub, _round_down(rows, sub))
        TR = max(sub, min(tr_budget, tr_cap))
    grid = _cdiv(rows, TR)               # ragged last block is fine: OOB rows
                                         # are never written back -> no padding.

    in_block = TR * C * itemsize
    out_block = TR * L * itemsize
    vmem_limit = int(min(vmem_cap,
                         max(32 * 1024 * 1024, 4 * (in_block + out_block))))

    out = pl.pallas_call(
        functools.partial(_amp_block_kernel, R=R),
        out_shape=jax.ShapeDtypeStruct((rows, L), dtype),
        grid=(grid,),
        in_specs=[pl.BlockSpec((TR, C), lambda i: (i, 0))],
        out_specs=pl.BlockSpec((TR, L), lambda i: (i, 0)),
        compiler_params=pltpu.CompilerParams(
            dimension_semantics=("parallel",),
            vmem_limit_bytes=vmem_limit,
        ),
        cost_estimate=pl.CostEstimate(
            flops=rows * C,
            transcendentals=0,
            bytes_accessed=(rows * C + rows * L) * itemsize,
        ),
    )(xr)
    return out.reshape(-1)


# ----------------------------------------------------------------------------
# Degenerate-shape kernel: lane-sparse (M_total, R) layout, copy-free.
# Only selected when the bin count has no usable lane-dense divisor.
# ----------------------------------------------------------------------------
def _amp_narrow_kernel(x_ref, o_ref):
    o_ref[...] = jnp.max(x_ref[...], axis=-1, keepdims=True)


def _amp_narrow(flat, R, dtype, sub):
    itemsize = jnp.dtype(dtype).itemsize
    M_total = flat.size // R
    xr = flat.reshape(M_total, R)        # contiguous reshape -> no data copy
    if M_total <= sub:
        TR = M_total
    else:
        tr_bytes_cap = max(sub, _round_down((2 * 1024 * 1024) // (R * itemsize), sub))
        TR = max(sub, min(_round_down(M_total, sub), tr_bytes_cap, 2048))
    grid = _cdiv(M_total, TR)
    out = pl.pallas_call(
        _amp_narrow_kernel,
        out_shape=jax.ShapeDtypeStruct((M_total, 1), dtype),
        grid=(grid,),
        in_specs=[pl.BlockSpec((TR, R), lambda i: (i, 0))],
        out_specs=pl.BlockSpec((TR, 1), lambda i: (i, 0)),
        compiler_params=pltpu.CompilerParams(
            dimension_semantics=("parallel",)),
    )(xr)
    return out.reshape(-1)


# ----------------------------------------------------------------------------
# Public wrapper (forward pass of the AMP module).
# ----------------------------------------------------------------------------
def amp_forward(x, regular_size: int = 16, *, target_block_bytes=None):
    """Pallas implementation of AMP.forward.

    x: any shape with leading batch dim N; elements per sample must be
       divisible by `regular_size`.
    returns: (N, numel_per_sample // regular_size)
    """
    R = int(regular_size)
    N = x.shape[0]
    total = x.size
    per_sample = total // N
    if per_sample * N != total or per_sample % R != 0:
        raise ValueError("elements per sample must be divisible by regular_size")
    M = per_sample // R
    M_total = N * M
    dtype = x.dtype
    itemsize = jnp.dtype(dtype).itemsize
    sub = 8 * max(1, 4 // itemsize)      # sublane granularity: 8/16/32 for 32/16/8-bit

    auto_block, vmem_cap = _hw_budgets()
    if target_block_bytes is None:
        target_block_bytes = auto_block

    flat = x.reshape(-1)                 # row-major flatten == torch .view(-1, R)

    # Pick the output-lane row width L so that L divides the total bin count:
    # the 2-D (rows, L*R) view is then an exact, copy-free reshape of the
    # input (no jnp.pad / slice) and no bin straddles a row boundary.
    # Tier 1: L a multiple of 128 (lane-dense input AND output).
    # Tier 2: L a multiple of lane_mult (input rows still multiples of 128
    #         lanes; output stores may be partially masked). Still copy-free.
    lane_mult = 128 // math.gcd(R, 128)
    L = 0
    tier1 = [c for c in (1024, 512, 256, 128) if M_total % c == 0]
    if tier1:
        good = [c for c in tier1 if M_total // c >= 8 * sub]
        L = good[0] if good else tier1[-1]   # widest with a multi-step grid, else most rows
    else:
        start = _round_down(min(1024, M_total), lane_mult)
        for cand in range(start, 0, -lane_mult):
            if M_total % cand == 0:
                L = cand
                break

    if L:
        out_flat = _amp_lane_dense(flat, R, L, dtype, sub,
                                   target_block_bytes, vmem_cap)
    else:
        # Bin count has (almost) no factors of two: lane-sparse but copy-free
        # path, chosen explicitly by shape — never via exception handling.
        out_flat = _amp_narrow(flat, R, dtype, sub)
    return out_flat.reshape(N, M)


if __name__ == "__main__":
    R = 16
    key = jax.random.PRNGKey(0)

    test_cases = [
        # (shape, dtype, extra kwargs)
        ((2, 4, 16, 16), jnp.float32, {}),               # canonical small NCHW (tier-1, single tiny block)
        ((2, 9, 32, 32), jnp.float32, {}),                # tier-1 with ragged last grid block (rows=9, TR=8)
        ((2, 3, 8, 16), jnp.float32, {}),                 # 48 bins -> tier-2 (full-dims block, no padding)
        ((2, 4, 16, 16), jnp.bfloat16, {}),               # 16-bit dtype (packed sublanes)
        ((2, 16, 64, 32), jnp.float32,                    # multi-step grid via a small block budget
         {"target_block_bytes": 64 * 1024}),
    ]

    for idx, (shape, dtype, kw) in enumerate(test_cases):
        k = jax.random.fold_in(key, idx)
        x = jax.random.normal(k, shape, dtype=dtype)
        y = jax.block_until_ready(amp_forward(x, R, **kw))
        # Reference in plain JAX (mirrors torch semantics exactly).
        ref = jnp.max(x.reshape(-1, R), axis=-1).reshape(shape[0], -1)
        assert y.shape == ref.shape, (idx, y.shape, ref.shape)
        assert bool(jnp.array_equal(y, ref)), f"mismatch vs reference (case {idx})"

    print("KERNEL_OK")
</pallas_src>

<mosaic_0001>
module attributes {stable_mosaic.version = 11 : i64} {
  func.func @_amp_block_kernel(%arg0: i32, %arg1: memref<1x2048xf32, #tpu.memory_space<vmem>>, %arg2: memref<1x128xf32, #tpu.memory_space<vmem>>) attributes {dimension_semantics = [#tpu.dimension_semantics<parallel>], iteration_bounds = array<i64: 1>, scalar_prefetch = 0 : i64, scratch_operands = 0 : i64, tpu.core_type = #tpu.core_type<tc>, window_params = [{transform_indices = @transform_0, window_bounds = array<i64: 1, 2048>}, {transform_indices = @transform_1, window_bounds = array<i64: 1, 128>}]} {
    %c0 = arith.constant 0 : index
    %c0_0 = arith.constant 0 : index
    %0 = vector.load %arg1[%c0, %c0_0] : memref<1x2048xf32, #tpu.memory_space<vmem>>, vector<1x2048xf32>
    %1 = vector.shape_cast %0 : vector<1x2048xf32> to vector<1x128x16xf32>
    %cst = arith.constant dense<0xFF800000> : vector<1x128xf32>
    %2 = vector.multi_reduction <maximumf>, %1, %cst [2] : vector<1x128x16xf32> to vector<1x128xf32>
    %c0_1 = arith.constant 0 : index
    %c0_2 = arith.constant 0 : index
    %3 = vector.load %arg2[%c0_1, %c0_2] : memref<1x128xf32, #tpu.memory_space<vmem>>, vector<1x128xf32>
    tpu.vector_store %arg2[%c0_1, %c0_2], %2 {strides = array<i32>} : memref<1x128xf32, #tpu.memory_space<vmem>>, vector<1x128xf32>,
    return
  }
  func.func @transform_0(%arg0: i32) -> (i32, i32) {
    %c0_i32 = arith.constant 0 : i32
    %c0_i32_0 = arith.constant 0 : i32
    return %arg0, %c0_i32 : i32, i32
  }
  func.func @transform_1(%arg0: i32) -> (i32, i32) {
    %c0_i32 = arith.constant 0 : i32
    %c0_i32_0 = arith.constant 0 : i32
    return %arg0, %c0_i32 : i32, i32
  }
}

</mosaic_0001>

<llo_original>
// kernel: tpu_custom_call.1
$region0: #{tpu_custom_call.1}
  #allocation0 [shape = 'u32[]', space=smem, size = 0x4, offset = 0x4, fixed_abs, tag = 'smem constant byte address 0x4 - core index']
  #allocation1 [shape = 'u32[144,128]{1,0:T(1,128)}', space=vmem, size = 0x12000, scoped, tag = 'internal scratch']
  %s0 = inlined_call_operand.hbm [shape: f32[1,2048], index: 0, kind: input, shape index: {}]
  %s1 = inlined_call_operand.hbm [shape: f32[1,128], index: 1, kind: output, shape index: {}]
  %s2 = sld [smem:[#allocation0]]
  $region18: #{tpu_custom_call.1} parent=0
    _
  %s4 = ssub.s32 1, %s2
  %s5 = scalar_select 0, %s4, %s2
  $region1: #{tpu_custom_call.1} parent=0
    #allocation2 [shape = 'u8[8192]{0}', space=vmem, size = 0x2000, scoped, tag = 'input window, operand 0, single buffered']
    #allocation3 [shape = 's32[1]{0}', space=sflag, size = 0x4, scoped, tag = 'scoped memory for tpu_custom_call.1']
    #allocation4 [shape = 's32[1]{0}', space=sflag, size = 0x4, scoped, tag = 'scoped memory for tpu_custom_call.1']
    #allocation5 [shape = 'u8[512]{0}', space=vmem, size = 0x400, scoped, tag = 'output window, operand 0, single buffered']
    %6 = vsyncpa [#allocation3], 0
    %7 = vsyncpa [#allocation4], 0
    // Predicated region
    $region2: #{tpu_custom_call.1} parent=1 // pred_check
      _
    $region3: #{tpu_custom_call.1} parent=1 // pred_check_branch
      %9 = sbr.rel (0) target = $region5
    $region4: #{tpu_custom_call.1} parent=1 // pred_region
      %s11 = ssub.s32 256, 256
      %12 = vsyncadd [#allocation3], %s11
      %s14 = sshll.u32 [#allocation2], 4
      %s15 = int_to_ptr.vmem [resolvable:$true] %s14
      %17 = dma.hbm_to_vmem [thread:$0]  %s0, 256, %s15, [#allocation3]
    $region5: #{tpu_custom_call.1} parent=1 // pred_fallthru
      _
    // Predicated region
    $region6: #{tpu_custom_call.1} parent=1 // pred_check
      _
    $region7: #{tpu_custom_call.1} parent=1 // pred_check_branch
      %19 = sbr.rel (0) target = $region9
    $region8: #{tpu_custom_call.1} parent=1 // pred_region
      %20 = dma.done [#allocation3], 256
    $region9: #{tpu_custom_call.1} parent=1 // pred_fallthru
      _
    %v21 = vld [vmem:[#allocation2] sm:$0xff]
    %v22 = vld [vmem:[#allocation2 + $0x8] sm:$0xff]
    %v24 = vrot.slane %v21, 1
    %25 = vrot.lane.b32.xlu0 %v21, 112
    %v26 = vpop.permute.xlu0 %25
    %v27 = vrot.slane %v26, 1
    %28 = vrot.lane.b32.xlu0 %v21, 96
    %v29 = vpop.permute.xlu0 %28
    %v30 = vrot.slane %v29, 1
    %31 = vrot.lane.b32.xlu0 %v21, 80
    %v32 = vpop.permute.xlu0 %31
    %v33 = vrot.slane %v32, 1
    %34 = vrot.lane.b32.xlu0 %v21, 64
    %v35 = vpop.permute.xlu0 %34
    %v36 = vrot.slane %v35, 1
    %37 = vrot.lane.b32.xlu0 %v21, 48
    %v38 = vpop.permute.xlu0 %37
    %v39 = vrot.slane %v38, 1
    %40 = vrot.lane.b32.xlu0 %v21, 32
    %v41 = vpop.permute.xlu0 %40
    %v42 = vrot.slane %v41, 1
    %43 = vrot.lane.b32.xlu0 %v21, 16
    %v44 = vpop.permute.xlu0 %43
    %v45 = vrot.slane %v44, 1
    %v46 = vrot.slane %v21, 2
    %v47 = vrot.slane %v26, 2
    %v48 = vrot.slane %v29, 2
    %v49 = vrot.slane %v32, 2
    %v50 = vrot.slane %v35, 2
    %v51 = vrot.slane %v38, 2
    %v52 = vrot.slane %v41, 2
    %v53 = vrot.slane %v44, 2
    %v54 = vrot.slane %v21, 3
    %v55 = vrot.slane %v26, 3
    %v56 = vrot.slane %v29, 3
    %v57 = vrot.slane %v32, 3
    %v58 = vrot.slane %v35, 3
    %v59 = vrot.slane %v38, 3
    %v60 = vrot.slane %v41, 3
    %v61 = vrot.slane %v44, 3
    %v62 = vrot.slane %v21, 4
    %v63 = vrot.slane %v26, 4
    %v64 = vrot.slane %v29, 4
    %v65 = vrot.slane %v32, 4
    %v66 = vrot.slane %v35, 4
    %v67 = vrot.slane %v38, 4
    %v68 = vrot.slane %v41, 4
    %v69 = vrot.slane %v44, 4
    %v70 = vrot.slane %v21, 5
    %v71 = vrot.slane %v26, 5
    %v72 = vrot.slane %v29, 5
    %v73 = vrot.slane %v32, 5
    %v74 = vrot.slane %v35, 5
    %v75 = vrot.slane %v38, 5
    %v76 = vrot.slane %v41, 5
    %v77 = vrot.slane %v44, 5
    %v78 = vrot.slane %v21, 6
    %v79 = vrot.slane %v26, 6
    %v80 = vrot.slane %v29, 6
    %v81 = vrot.slane %v32, 6
    %v82 = vrot.slane %v35, 6
    %v83 = vrot.slane %v38, 6
    %v84 = vrot.slane %v41, 6
    %v85 = vrot.slane %v44, 6
    %v86 = vrot.slane %v21, 7
    %v87 = vrot.slane %v26, 7
    %v88 = vrot.slane %v29, 7
    %v89 = vrot.slane %v32, 7
    %v90 = vrot.slane %v35, 7
    %v91 = vrot.slane %v38, 7
    %v92 = vrot.slane %v41, 7
    %v93 = vrot.slane %v44, 7
    %v95 = vrot.slane %v22, 1
    %96 = vrot.lane.b32.xlu0 %v22, 112
    %v97 = vpop.permute.xlu0 %96
    %v98 = vrot.slane %v97, 1
    %99 = vrot.lane.b32.xlu0 %v22, 96
    %v100 = vpop.permute.xlu0 %99
    %v101 = vrot.slane %v100, 1
    %102 = vrot.lane.b32.xlu0 %v22, 80
    %v103 = vpop.permute.xlu0 %102
    %v104 = vrot.slane %v103, 1
    %105 = vrot.lane.b32.xlu0 %v22, 64
    %v106 = vpop.permute.xlu0 %105
    %v107 = vrot.slane %v106, 1
    %108 = vrot.lane.b32.xlu0 %v22, 48
    %v109 = vpop.permute.xlu0 %108
    %v110 = vrot.slane %v109, 1
    %111 = vrot.lane.b32.xlu0 %v22, 32
    %v112 = vpop.permute.xlu0 %111
    %v113 = vrot.slane %v112, 1
    %114 = vrot.lane.b32.xlu0 %v22, 16
    %v115 = vpop.permute.xlu0 %114
    %v116 = vrot.slane %v115, 1
    %v117 = vrot.slane %v22, 2
    %v118 = vrot.slane %v97, 2
    %v119 = vrot.slane %v100, 2
    %v120 = vrot.slane %v103, 2
    %v121 = vrot.slane %v106, 2
    %v122 = vrot.slane %v109, 2
    %v123 = vrot.slane %v112, 2
    %v124 = vrot.slane %v115, 2
    %v125 = vrot.slane %v22, 3
    %v126 = vrot.slane %v97, 3
    %v127 = vrot.slane %v100, 3
    %v128 = vrot.slane %v103, 3
    %v129 = vrot.slane %v106, 3
    %v130 = vrot.slane %v109, 3
    %v131 = vrot.slane %v112, 3
    %v132 = vrot.slane %v115, 3
    %v133 = vrot.slane %v22, 4
    %v134 = vrot.slane %v97, 4
    %v135 = vrot.slane %v100, 4
    %v136 = vrot.slane %v103, 4
    %v137 = vrot.slane %v106, 4
    %v138 = vrot.slane %v109, 4
    %v139 = vrot.slane %v112, 4
    %v140 = vrot.slane %v115, 4
    %v141 = vrot.slane %v22, 5
    %v142 = vrot.slane %v97, 5
    %v143 = vrot.slane %v100, 5
    %v144 = vrot.slane %v103, 5
    %v145 = vrot.slane %v106, 5
    %v146 = vrot.slane %v109, 5
    %v147 = vrot.slane %v112, 5
    %v148 = vrot.slane %v115, 5
    %v149 = vrot.slane %v22, 6
    %v150 = vrot.slane %v97, 6
    %v151 = vrot.slane %v100, 6
    %v152 = vrot.slane %v103, 6
    %v153 = vrot.slane %v106, 6
    %v154 = vrot.slane %v109, 6
    %v155 = vrot.slane %v112, 6
    %v156 = vrot.slane %v115, 6
    %v157 = vrot.slane %v22, 7
    %v158 = vrot.slane %v97, 7
    %v159 = vrot.slane %v100, 7
    %v160 = vrot.slane %v103, 7
    %v161 = vrot.slane %v106, 7
    %v162 = vrot.slane %v109, 7
    %v163 = vrot.slane %v112, 7
    %v164 = vrot.slane %v115, 7
    %v165 = vcombine.low %v21, %v26
    %v166 = vcombine.low %v29, %v32
    %v167 = vcombine.low %v35, %v38
    %v168 = vcombine.low %v41, %v44
    %v170 = vunpack.c.l.s4 1966171168
    %v171 = vunpack.c.0.s8 %v170
    %v172 = vlaneseq
    %v173 = vshrl.u32 %v172, 7
    %v174 = vsub.s32 %v171, %v173
    %v175 = vrot.slane %v165, %v174
    %v177 = vunpack.c.l.s4 1966171168
    %v178 = vunpack.c.0.s8 %v177
    %v179 = vlaneseq
    %v180 = vshrl.u32 %v179, 7
    %v181 = vsub.s32 %v178, %v180
    %v182 = vrot.slane %v166, %v181
    %v184 = vunpack.c.l.s4 1966171168
    %v185 = vunpack.c.0.s8 %v184
    %v186 = vlaneseq
    %v187 = vshrl.u32 %v186, 7
    %v188 = vsub.s32 %v185, %v187
    %v189 = vrot.slane %v167, %v188
    %v191 = vunpack.c.l.s4 1966171168
    %v192 = vunpack.c.0.s8 %v191
    %v193 = vlaneseq
    %v194 = vshrl.u32 %v193, 7
    %v195 = vsub.s32 %v192, %v194
    %v196 = vrot.slane %v168, %v195
    %v197 = vcombine.low %v175, %v182
    %v198 = vcombine.low %v189, %v196
    %v200 = vunpack.c.l.s4 1966171168
    %v201 = vunpack.c.0.s8 %v200
    %v202 = vlaneseq
    %v203 = vshrl.u32 %v202, 7
    %v204 = vsub.s32 %v201, %v203
    %v205 = vrot.slane %v197, %v204
    %v207 = vunpack.c.l.s4 1966171168
    %v208 = vunpack.c.0.s8 %v207
    %v209 = vlaneseq
    %v210 = vshrl.u32 %v209, 7
    %v211 = vsub.s32 %v208, %v210
    %v212 = vrot.slane %v198, %v211
    %v213 = vcombine.low %v205, %v212
    %v214 = vcombine.low %v24, %v27
    %v215 = vcombine.low %v30, %v33
    %v216 = vcombine.low %v36, %v39
    %v217 = vcombine.low %v42, %v45
    %v219 = vunpack.c.l.s4 1966171168
    %v220 = vunpack.c.0.s8 %v219
    %v221 = vlaneseq
    %v222 = vshrl.u32 %v221, 7
    %v223 = vsub.s32 %v220, %v222
    %v224 = vrot.slane %v214, %v223
    %v226 = vunpack.c.l.s4 1966171168
    %v227 = vunpack.c.0.s8 %v226
    %v228 = vlaneseq
    %v229 = vshrl.u32 %v228, 7
    %v230 = vsub.s32 %v227, %v229
    %v231 = vrot.slane %v215, %v230
    %v233 = vunpack.c.l.s4 1966171168
    %v234 = vunpack.c.0.s8 %v233
    %v235 = vlaneseq
    %v236 = vshrl.u32 %v235, 7
    %v237 = vsub.s32 %v234, %v236
    %v238 = vrot.slane %v216, %v237
    %v240 = vunpack.c.l.s4 1966171168
    %v241 = vunpack.c.0.s8 %v240
    %v242 = vlaneseq
    %v243 = vshrl.u32 %v242, 7
    %v244 = vsub.s32 %v241, %v243
    %v245 = vrot.slane %v217, %v244
    %v246 = vcombine.low %v224, %v231
    %v247 = vcombine.low %v238, %v245
    %v249 = vunpack.c.l.s4 1966171168
    %v250 = vunpack.c.0.s8 %v249
    %v251 = vlaneseq
    %v252 = vshrl.u32 %v251, 7
    %v253 = vsub.s32 %v250, %v252
    %v254 = vrot.slane %v246, %v253
    %v256 = vunpack.c.l.s4 1966171168
    %v257 = vunpack.c.0.s8 %v256
    %v258 = vlaneseq
    %v259 = vshrl.u32 %v258, 7
    %v260 = vsub.s32 %v257, %v259
    %v261 = vrot.slane %v247, %v260
    %v262 = vcombine.low %v254, %v261
    %v263 = vcombine.low %v46, %v47
    %v264 = vcombine.low %v48, %v49
    %v265 = vcombine.low %v50, %v51
    %v266 = vcombine.low %v52, %v53
    %v268 = vunpack.c.l.s4 1966171168
    %v269 = vunpack.c.0.s8 %v268
    %v270 = vlaneseq
    %v271 = vshrl.u32 %v270, 7
    %v272 = vsub.s32 %v269, %v271
    %v273 = vrot.slane %v263, %v272
    %v275 = vunpack.c.l.s4 1966171168
    %v276 = vunpack.c.0.s8 %v275
    %v277 = vlaneseq
    %v278 = vshrl.u32 %v277, 7
    %v279 = vsub.s32 %v276, %v278
    %v280 = vrot.slane %v264, %v279
    %v282 = vunpack.c.l.s4 1966171168
    %v283 = vunpack.c.0.s8 %v282
    %v284 = vlaneseq
    %v285 = vshrl.u32 %v284, 7
    %v286 = vsub.s32 %v283, %v285
    %v287 = vrot.slane %v265, %v286
    %v289 = vunpack.c.l.s4 1966171168
    %v290 = vunpack.c.0.s8 %v289
    %v291 = vlaneseq
    %v292 = vshrl.u32 %v291, 7
    %v293 = vsub.s32 %v290, %v292
    %v294 = vrot.slane %v266, %v293
    %v295 = vcombine.low %v273, %v280
    %v296 = vcombine.low %v287, %v294
    %v298 = vunpack.c.l.s4 1966171168
    %v299 = vunpack.c.0.s8 %v298
    %v300 = vlaneseq
    %v301 = vshrl.u32 %v300, 7
    %v302 = vsub.s32 %v299, %v301
    %v303 = vrot.slane %v295, %v302
    %v305 = vunpack.c.l.s4 1966171168
    %v306 = vunpack.c.0.s8 %v305
    %v307 = vlaneseq
    %v308 = vshrl.u32 %v307, 7
    %v309 = vsub.s32 %v306, %v308
    %v310 = vrot.slane %v296, %v309
    %v311 = vcombine.low %v303, %v310
    %v312 = vcombine.low %v54, %v55
    %v313 = vcombine.low %v56, %v57
    %v314 = vcombine.low %v58, %v59
    %v315 = vcombine.low %v60, %v61
    %v317 = vunpack.c.l.s4 1966171168
    %v318 = vunpack.c.0.s8 %v317
    %v319 = vlaneseq
    %v320 = vshrl.u32 %v319, 7
    %v321 = vsub.s32 %v318, %v320
    %v322 = vrot.slane %v312, %v321
    %v324 = vunpack.c.l.s4 1966171168
    %v325 = vunpack.c.0.s8 %v324
    %v326 = vlaneseq
    %v327 = vshrl.u32 %v326, 7
    %v328 = vsub.s32 %v325, %v327
    %v329 = vrot.slane %v313, %v328
    %v331 = vunpack.c.l.s4 1966171168
    %v332 = vunpack.c.0.s8 %v331
    %v333 = vlaneseq
    %v334 = vshrl.u32 %v333, 7
    %v335 = vsub.s32 %v332, %v334
    %v336 = vrot.slane %v314, %v335
    %v338 = vunpack.c.l.s4 1966171168
    %v339 = vunpack.c.0.s8 %v338
    %v340 = vlaneseq
    %v341 = vshrl.u32 %v340, 7
    %v342 = vsub.s32 %v339, %v341
    %v343 = vrot.slane %v315, %v342
    %v344 = vcombine.low %v322, %v329
    %v345 = vcombine.low %v336, %v343
    %v347 = vunpack.c.l.s4 1966171168
    %v348 = vunpack.c.0.s8 %v347
    %v349 = vlaneseq
    %v350 = vshrl.u32 %v349, 7
    %v351 = vsub.s32 %v348, %v350
    %v352 = vrot.slane %v344, %v351
    %v354 = vunpack.c.l.s4 1966171168
    %v355 = vunpack.c.0.s8 %v354
    %v356 = vlaneseq
    %v357 = vshrl.u32 %v356, 7
    %v358 = vsub.s32 %v355, %v357
    %v359 = vrot.slane %v345, %v358
    %v360 = vcombine.low %v352, %v359
    %v361 = vcombine.low %v62, %v63
    %v362 = vcombine.low %v64, %v65
    %v363 = vcombine.low %v66, %v67
    %v364 = vcombine.low %v68, %v69
    %v366 = vunpack.c.l.s4 1966171168
    %v367 = vunpack.c.0.s8 %v366
    %v368 = vlaneseq
    %v369 = vshrl.u32 %v368, 7
    %v370 = vsub.s32 %v367, %v369
    %v371 = vrot.slane %v361, %v370
    %v373 = vunpack.c.l.s4 1966171168
    %v374 = vunpack.c.0.s8 %v373
    %v375 = vlaneseq
    %v376 = vshrl.u32 %v375, 7
    %v377 = vsub.s32 %v374, %v376
    %v378 = vrot.slane %v362, %v377
    %v380 = vunpack.c.l.s4 1966171168
    %v381 = vunpack.c.0.s8 %v380
    %v382 = vlaneseq
    %v383 = vshrl.u32 %v382, 7
    %v384 = vsub.s32 %v381, %v383
    %v385 = vrot.slane %v363, %v384
    %v387 = vunpack.c.l.s4 1966171168
    %v388 = vunpack.c.0.s8 %v387
    %v389 = vlaneseq
    %v390 = vshrl.u32 %v389, 7
    %v391 = vsub.s32 %v388, %v390
    %v392 = vrot.slane %v364, %v391
    %v393 = vcombine.low %v371, %v378
    %v394 = vcombine.low %v385, %v392
    %v396 = vunpack.c.l.s4 1966171168
    %v397 = vunpack.c.0.s8 %v396
    %v398 = vlaneseq
    %v399 = vshrl.u32 %v398, 7
    %v400 = vsub.s32 %v397, %v399
    %v401 = vrot.slane %v393, %v400
    %v403 = vunpack.c.l.s4 1966171168
    %v404 = vunpack.c.0.s8 %v403
    %v405 = vlaneseq
    %v406 = vshrl.u32 %v405, 7
    %v407 = vsub.s32 %v404, %v406
    %v408 = vrot.slane %v394, %v407
    %v409 = vcombine.low %v401, %v408
    %v410 = vcombine.low %v70, %v71
    %v411 = vcombine.low %v72, %v73
    %v412 = vcombine.low %v74, %v75
    %v413 = vcombine.low %v76, %v77
    %v415 = vunpack.c.l.s4 1966171168
    %v416 = vunpack.c.0.s8 %v415
    %v417 = vlaneseq
    %v418 = vshrl.u32 %v417, 7
    %v419 = vsub.s32 %v416, %v418
    %v420 = vrot.slane %v410, %v419
    %v422 = vunpack.c.l.s4 1966171168
    %v423 = vunpack.c.0.s8 %v422
    %v424 = vlaneseq
    %v425 = vshrl.u32 %v424, 7
    %v426 = vsub.s32 %v423, %v425
    %v427 = vrot.slane %v411, %v426
    %v429 = vunpack.c.l.s4 1966171168
    %v430 = vunpack.c.0.s8 %v429
    %v431 = vlaneseq
    %v432 = vshrl.u32 %v431, 7
    %v433 = vsub.s32 %v430, %v432
    %v434 = vrot.slane %v412, %v433
    %v436 = vunpack.c.l.s4 1966171168
    %v437 = vunpack.c.0.s8 %v436
    %v438 = vlaneseq
    %v439 = vshrl.u32 %v438, 7
    %v440 = vsub.s32 %v437, %v439
    %v441 = vrot.slane %v413, %v440
    %v442 = vcombine.low %v420, %v427
    %v443 = vcombine.low %v434, %v441
    %v445 = vunpack.c.l.s4 1966171168
    %v446 = vunpack.c.0.s8 %v445
    %v447 = vlaneseq
    %v448 = vshrl.u32 %v447, 7
    %v449 = vsub.s32 %v446, %v448
    %v450 = vrot.slane %v442, %v449
    %v452 = vunpack.c.l.s4 1966171168
    %v453 = vunpack.c.0.s8 %v452
    %v454 = vlaneseq
    %v455 = vshrl.u32 %v454, 7
    %v456 = vsub.s32 %v453, %v455
    %v457 = vrot.slane %v443, %v456
    %v458 = vcombine.low %v450, %v457
    %v459 = vcombine.low %v78, %v79
    %v460 = vcombine.low %v80, %v81
    %v461 = vcombine.low %v82, %v83
    %v462 = vcombine.low %v84, %v85
    %v464 = vunpack.c.l.s4 1966171168
    %v465 = vunpack.c.0.s8 %v464
    %v466 = vlaneseq
    %v467 = vshrl.u32 %v466, 7
    %v468 = vsub.s32 %v465, %v467
    %v469 = vrot.slane %v459, %v468
    %v471 = vunpack.c.l.s4 1966171168
    %v472 = vunpack.c.0.s8 %v471
    %v473 = vlaneseq
    %v474 = vshrl.u32 %v473, 7
    %v475 = vsub.s32 %v472, %v474
    %v476 = vrot.slane %v460, %v475
    %v478 = vunpack.c.l.s4 1966171168
    %v479 = vunpack.c.0.s8 %v478
    %v480 = vlaneseq
    %v481 = vshrl.u32 %v480, 7
    %v482 = vsub.s32 %v479, %v481
    %v483 = vrot.slane %v461, %v482
    %v485 = vunpack.c.l.s4 1966171168
    %v486 = vunpack.c.0.s8 %v485
    %v487 = vlaneseq
    %v488 = vshrl.u32 %v487, 7
    %v489 = vsub.s32 %v486, %v488
    %v490 = vrot.slane %v462, %v489
    %v491 = vcombine.low %v469, %v476
    %v492 = vcombine.low %v483, %v490
    %v494 = vunpack.c.l.s4 1966171168
    %v495 = vunpack.c.0.s8 %v494
    %v496 = vlaneseq
    %v497 = vshrl.u32 %v496, 7
    %v498 = vsub.s32 %v495, %v497
    %v499 = vrot.slane %v491, %v498
    %v501 = vunpack.c.l.s4 1966171168
    %v502 = vunpack.c.0.s8 %v501
    %v503 = vlaneseq
    %v504 = vshrl.u32 %v503, 7
    %v505 = vsub.s32 %v502, %v504
    %v506 = vrot.slane %v492, %v505
    %v507 = vcombine.low %v499, %v506
    %v508 = vcombine.low %v86, %v87
    %v509 = vcombine.low %v88, %v89
    %v510 = vcombine.low %v90, %v91
    %v511 = vcombine.low %v92, %v93
    %v513 = vunpack.c.l.s4 1966171168
    %v514 = vunpack.c.0.s8 %v513
    %v515 = vlaneseq
    %v516 = vshrl.u32 %v515, 7
    %v517 = vsub.s32 %v514, %v516
    %v518 = vrot.slane %v508, %v517
    %v520 = vunpack.c.l.s4 1966171168
    %v521 = vunpack.c.0.s8 %v520
    %v522 = vlaneseq
    %v523 = vshrl.u32 %v522, 7
    %v524 = vsub.s32 %v521, %v523
    %v525 = vrot.slane %v509, %v524
    %v527 = vunpack.c.l.s4 1966171168
    %v528 = vunpack.c.0.s8 %v527
    %v529 = vlaneseq
    %v530 = vshrl.u32 %v529, 7
    %v531 = vsub.s32 %v528, %v530
    %v532 = vrot.slane %v510, %v531
    %v534 = vunpack.c.l.s4 1966171168
    %v535 = vunpack.c.0.s8 %v534
    %v536 = vlaneseq
    %v537 = vshrl.u32 %v536, 7
    %v538 = vsub.s32 %v535, %v537
    %v539 = vrot.slane %v511, %v538
    %v540 = vcombine.low %v518, %v525
    %v541 = vcombine.low %v532, %v539
    %v543 = vunpack.c.l.s4 1966171168
    %v544 = vunpack.c.0.s8 %v543
    %v545 = vlaneseq
    %v546 = vshrl.u32 %v545, 7
    %v547 = vsub.s32 %v544, %v546
    %v548 = vrot.slane %v540, %v547
    %v550 = vunpack.c.l.s4 1966171168
    %v551 = vunpack.c.0.s8 %v550
    %v552 = vlaneseq
    %v553 = vshrl.u32 %v552, 7
    %v554 = vsub.s32 %v551, %v553
    %v555 = vrot.slane %v541, %v554
    %v556 = vcombine.low %v548, %v555
    %v557 = vcombine.low %v22, %v97
    %v558 = vcombine.low %v100, %v103
    %v559 = vcombine.low %v106, %v109
    %v560 = vcombine.low %v112, %v115
    %v562 = vunpack.c.l.s4 1966171168
    %v563 = vunpack.c.0.s8 %v562
    %v564 = vlaneseq
    %v565 = vshrl.u32 %v564, 7
    %v566 = vsub.s32 %v563, %v565
    %v567 = vrot.slane %v557, %v566
    %v569 = vunpack.c.l.s4 1966171168
    %v570 = vunpack.c.0.s8 %v569
    %v571 = vlaneseq
    %v572 = vshrl.u32 %v571, 7
    %v573 = vsub.s32 %v570, %v572
    %v574 = vrot.slane %v558, %v573
    %v576 = vunpack.c.l.s4 1966171168
    %v577 = vunpack.c.0.s8 %v576
    %v578 = vlaneseq
    %v579 = vshrl.u32 %v578, 7
    %v580 = vsub.s32 %v577, %v579
    %v581 = vrot.slane %v559, %v580
    %v583 = vunpack.c.l.s4 1966171168
    %v584 = vunpack.c.0.s8 %v583
    %v585 = vlaneseq
    %v586 = vshrl.u32 %v585, 7
    %v587 = vsub.s32 %v584, %v586
    %v588 = vrot.slane %v560, %v587
    %v589 = vcombine.low %v567, %v574
    %v590 = vcombine.low %v581, %v588
    %v592 = vunpack.c.l.s4 1966171168
    %v593 = vunpack.c.0.s8 %v592
    %v594 = vlaneseq
    %v595 = vshrl.u32 %v594, 7
    %v596 = vsub.s32 %v593, %v595
    %v597 = vrot.slane %v589, %v596
    %v599 = vunpack.c.l.s4 1966171168
    %v600 = vunpack.c.0.s8 %v599
    %v601 = vlaneseq
    %v602 = vshrl.u32 %v601, 7
    %v603 = vsub.s32 %v600, %v602
    %v604 = vrot.slane %v590, %v603
    %v605 = vcombine.low %v597, %v604
    %v606 = vcombine.low %v95, %v98
    %v607 = vcombine.low %v101, %v104
    %v608 = vcombine.low %v107, %v110
    %v609 = vcombine.low %v113, %v116
    %v611 = vunpack.c.l.s4 1966171168
    %v612 = vunpack.c.0.s8 %v611
    %v613 = vlaneseq
    %v614 = vshrl.u32 %v613, 7
    %v615 = vsub.s32 %v612, %v614
    %v616 = vrot.slane %v606, %v615
    %v618 = vunpack.c.l.s4 1966171168
    %v619 = vunpack.c.0.s8 %v618
    %v620 = vlaneseq
    %v621 = vshrl.u32 %v620, 7
    %v622 = vsub.s32 %v619, %v621
    %v623 = vrot.slane %v607, %v622
    %v625 = vunpack.c.l.s4 1966171168
    %v626 = vunpack.c.0.s8 %v625
    %v627 = vlaneseq
    %v628 = vshrl.u32 %v627, 7
    %v629 = vsub.s32 %v626, %v628
    %v630 = vrot.slane %v608, %v629
    %v632 = vunpack.c.l.s4 1966171168
    %v633 = vunpack.c.0.s8 %v632
    %v634 = vlaneseq
    %v635 = vshrl.u32 %v634, 7
    %v636 = vsub.s32 %v633, %v635
    %v637 = vrot.slane %v609, %v636
    %v638 = vcombine.low %v616, %v623
    %v639 = vcombine.low %v630, %v637
    %v641 = vunpack.c.l.s4 1966171168
    %v642 = vunpack.c.0.s8 %v641
    %v643 = vlaneseq
    %v644 = vshrl.u32 %v643, 7
    %v645 = vsub.s32 %v642, %v644
    %v646 = vrot.slane %v638, %v645
    %v648 = vunpack.c.l.s4 1966171168
    %v649 = vunpack.c.0.s8 %v648
    %v650 = vlaneseq
    %v651 = vshrl.u32 %v650, 7
    %v652 = vsub.s32 %v649, %v651
    %v653 = vrot.slane %v639, %v652
    %v654 = vcombine.low %v646, %v653
    %v655 = vcombine.low %v117, %v118
    %v656 = vcombine.low %v119, %v120
    %v657 = vcombine.low %v121, %v122
    %v658 = vcombine.low %v123, %v124
    %v660 = vunpack.c.l.s4 1966171168
    %v661 = vunpack.c.0.s8 %v660
    %v662 = vlaneseq
    %v663 = vshrl.u32 %v662, 7
    %v664 = vsub.s32 %v661, %v663
    %v665 = vrot.slane %v655, %v664
    %v667 = vunpack.c.l.s4 1966171168
    %v668 = vunpack.c.0.s8 %v667
    %v669 = vlaneseq
    %v670 = vshrl.u32 %v669, 7
    %v671 = vsub.s32 %v668, %v670
    %v672 = vrot.slane %v656, %v671
    %v674 = vunpack.c.l.s4 1966171168
    %v675 = vunpack.c.0.s8 %v674
    %v676 = vlaneseq
    %v677 = vshrl.u32 %v676, 7
    %v678 = vsub.s32 %v675, %v677
    %v679 = vrot.slane %v657, %v678
    %v681 = vunpack.c.l.s4 1966171168
    %v682 = vunpack.c.0.s8 %v681
    %v683 = vlaneseq
    %v684 = vshrl.u32 %v683, 7
    %v685 = vsub.s32 %v682, %v684
    %v686 = vrot.slane %v658, %v685
    %v687 = vcombine.low %v665, %v672
    %v688 = vcombine.low %v679, %v686
    %v690 = vunpack.c.l.s4 1966171168
    %v691 = vunpack.c.0.s8 %v690
    %v692 = vlaneseq
    %v693 = vshrl.u32 %v692, 7
    %v694 = vsub.s32 %v691, %v693
    %v695 = vrot.slane %v687, %v694
    %v697 = vunpack.c.l.s4 1966171168
    %v698 = vunpack.c.0.s8 %v697
    %v699 = vlaneseq
    %v700 = vshrl.u32 %v699, 7
    %v701 = vsub.s32 %v698, %v700
    %v702 = vrot.slane %v688, %v701
    %v703 = vcombine.low %v695, %v702
    %v704 = vcombine.low %v125, %v126
    %v705 = vcombine.low %v127, %v128
    %v706 = vcombine.low %v129, %v130
    %v707 = vcombine.low %v131, %v132
    %v709 = vunpack.c.l.s4 1966171168
    %v710 = vunpack.c.0.s8 %v709
    %v711 = vlaneseq
    %v712 = vshrl.u32 %v711, 7
    %v713 = vsub.s32 %v710, %v712
    %v714 = vrot.slane %v704, %v713
    %v716 = vunpack.c.l.s4 1966171168
    %v717 = vunpack.c.0.s8 %v716
    %v718 = vlaneseq
    %v719 = vshrl.u32 %v718, 7
    %v720 = vsub.s32 %v717, %v719
    %v721 = vrot.slane %v705, %v720
    %v723 = vunpack.c.l.s4 1966171168
    %v724 = vunpack.c.0.s8 %v723
    %v725 = vlaneseq
    %v726 = vshrl.u32 %v725, 7
    %v727 = vsub.s32 %v724, %v726
    %v728 = vrot.slane %v706, %v727
    %v730 = vunpack.c.l.s4 1966171168
    %v731 = vunpack.c.0.s8 %v730
    %v732 = vlaneseq
    %v733 = vshrl.u32 %v732, 7
    %v734 = vsub.s32 %v731, %v733
    %v735 = vrot.slane %v707, %v734
    %v736 = vcombine.low %v714, %v721
    %v737 = vcombine.low %v728, %v735
    %v739 = vunpack.c.l.s4 1966171168
    %v740 = vunpack.c.0.s8 %v739
    %v741 = vlaneseq
    %v742 = vshrl.u32 %v741, 7
    %v743 = vsub.s32 %v740, %v742
    %v744 = vrot.slane %v736, %v743
    %v746 = vunpack.c.l.s4 1966171168
    %v747 = vunpack.c.0.s8 %v746
    %v748 = vlaneseq
    %v749 = vshrl.u32 %v748, 7
    %v750 = vsub.s32 %v747, %v749
    %v751 = vrot.slane %v737, %v750
    %v752 = vcombine.low %v744, %v751
    %v753 = vcombine.low %v133, %v134
    %v754 = vcombine.low %v135, %v136
    %v755 = vcombine.low %v137, %v138
    %v756 = vcombine.low %v139, %v140
    %v758 = vunpack.c.l.s4 1966171168
    %v759 = vunpack.c.0.s8 %v758
    %v760 = vlaneseq
    %v761 = vshrl.u32 %v760, 7
    %v762 = vsub.s32 %v759, %v761
    %v763 = vrot.slane %v753, %v762
    %v765 = vunpack.c.l.s4 1966171168
    %v766 = vunpack.c.0.s8 %v765
    %v767 = vlaneseq
    %v768 = vshrl.u32 %v767, 7
    %v769 = vsub.s32 %v766, %v768
    %v770 = vrot.slane %v754, %v769
    %v772 = vunpack.c.l.s4 1966171168
    %v773 = vunpack.c.0.s8 %v772
    %v774 = vlaneseq
    %v775 = vshrl.u32 %v774, 7
    %v776 = vsub.s32 %v773, %v775
    %v777 = vrot.slane %v755, %v776
    %v779 = vunpack.c.l.s4 1966171168
    %v780 = vunpack.c.0.s8 %v779
    %v781 = vlaneseq
    %v782 = vshrl.u32 %v781, 7
    %v783 = vsub.s32 %v780, %v782
    %v784 = vrot.slane %v756, %v783
    %v785 = vcombine.low %v763, %v770
    %v786 = vcombine.low %v777, %v784
    %v788 = vunpack.c.l.s4 1966171168
    %v789 = vunpack.c.0.s8 %v788
    %v790 = vlaneseq
    %v791 = vshrl.u32 %v790, 7
    %v792 = vsub.s32 %v789, %v791
    %v793 = vrot.slane %v785, %v792
    %v795 = vunpack.c.l.s4 1966171168
    %v796 = vunpack.c.0.s8 %v795
    %v797 = vlaneseq
    %v798 = vshrl.u32 %v797, 7
    %v799 = vsub.s32 %v796, %v798
    %v800 = vrot.slane %v786, %v799
    %v801 = vcombine.low %v793, %v800
    %v802 = vcombine.low %v141, %v142
    %v803 = vcombine.low %v143, %v144
    %v804 = vcombine.low %v145, %v146
    %v805 = vcombine.low %v147, %v148
    %v807 = vunpack.c.l.s4 1966171168
    %v808 = vunpack.c.0.s8 %v807
    %v809 = vlaneseq
    %v810 = vshrl.u32 %v809, 7
    %v811 = vsub.s32 %v808, %v810
    %v812 = vrot.slane %v802, %v811
    %v814 = vunpack.c.l.s4 1966171168
    %v815 = vunpack.c.0.s8 %v814
    %v816 = vlaneseq
    %v817 = vshrl.u32 %v816, 7
    %v818 = vsub.s32 %v815, %v817
    %v819 = vrot.slane %v803, %v818
    %v821 = vunpack.c.l.s4 1966171168
    %v822 = vunpack.c.0.s8 %v821
    %v823 = vlaneseq
    %v824 = vshrl.u32 %v823, 7
    %v825 = vsub.s32 %v822, %v824
    %v826 = vrot.slane %v804, %v825
    %v828 = vunpack.c.l.s4 1966171168
    %v829 = vunpack.c.0.s8 %v828
    %v830 = vlaneseq
    %v831 = vshrl.u32 %v830, 7
    %v832 = vsub.s32 %v829, %v831
    %v833 = vrot.slane %v805, %v832
    %v834 = vcombine.low %v812, %v819
    %v835 = vcombine.low %v826, %v833
    %v837 = vunpack.c.l.s4 1966171168
    %v838 = vunpack.c.0.s8 %v837
    %v839 = vlaneseq
    %v840 = vshrl.u32 %v839, 7
    %v841 = vsub.s32 %v838, %v840
    %v842 = vrot.slane %v834, %v841
    %v844 = vunpack.c.l.s4 1966171168
    %v845 = vunpack.c.0.s8 %v844
    %v846 = vlaneseq
    %v847 = vshrl.u32 %v846, 7
    %v848 = vsub.s32 %v845, %v847
    %v849 = vrot.slane %v835, %v848
    %v850 = vcombine.low %v842, %v849
    %v851 = vcombine.low %v149, %v150
    %v852 = vcombine.low %v151, %v152
    %v853 = vcombine.low %v153, %v154
    %v854 = vcombine.low %v155, %v156
    %v856 = vunpack.c.l.s4 1966171168
    %v857 = vunpack.c.0.s8 %v856
    %v858 = vlaneseq
    %v859 = vshrl.u32 %v858, 7
    %v860 = vsub.s32 %v857, %v859
    %v861 = vrot.slane %v851, %v860
    %v863 = vunpack.c.l.s4 1966171168
    %v864 = vunpack.c.0.s8 %v863
    %v865 = vlaneseq
    %v866 = vshrl.u32 %v865, 7
    %v867 = vsub.s32 %v864, %v866
    %v868 = vrot.slane %v852, %v867
    %v870 = vunpack.c.l.s4 1966171168
    %v871 = vunpack.c.0.s8 %v870
    %v872 = vlaneseq
    %v873 = vshrl.u32 %v872, 7
    %v874 = vsub.s32 %v871, %v873
    %v875 = vrot.slane %v853, %v874
    %v877 = vunpack.c.l.s4 1966171168
    %v878 = vunpack.c.0.s8 %v877
    %v879 = vlaneseq
    %v880 = vshrl.u32 %v879, 7
    %v881 = vsub.s32 %v878, %v880
    %v882 = vrot.slane %v854, %v881
    %v883 = vcombine.low %v861, %v868
    %v884 = vcombine.low %v875, %v882
    %v886 = vunpack.c.l.s4 1966171168
    %v887 = vunpack.c.0.s8 %v886
    %v888 = vlaneseq
    %v889 = vshrl.u32 %v888, 7
    %v890 = vsub.s32 %v887, %v889
    %v891 = vrot.slane %v883, %v890
    %v893 = vunpack.c.l.s4 1966171168
    %v894 = vunpack.c.0.s8 %v893
    %v895 = vlaneseq
    %v896 = vshrl.u32 %v895, 7
    %v897 = vsub.s32 %v894, %v896
    %v898 = vrot.slane %v884, %v897
    %v899 = vcombine.low %v891, %v898
    %v900 = vcombine.low %v157, %v158
    %v901 = vcombine.low %v159, %v160
    %v902 = vcombine.low %v161, %v162
    %v903 = vcombine.low %v163, %v164
    %v905 = vunpack.c.l.s4 1966171168
    %v906 = vunpack.c.0.s8 %v905
    %v907 = vlaneseq
    %v908 = vshrl.u32 %v907, 7
    %v909 = vsub.s32 %v906, %v908
    %v910 = vrot.slane %v900, %v909
    %v912 = vunpack.c.l.s4 1966171168
    %v913 = vunpack.c.0.s8 %v912
    %v914 = vlaneseq
    %v915 = vshrl.u32 %v914, 7
    %v916 = vsub.s32 %v913, %v915
    %v917 = vrot.slane %v901, %v916
    %v919 = vunpack.c.l.s4 1966171168
    %v920 = vunpack.c.0.s8 %v919
    %v921 = vlaneseq
    %v922 = vshrl.u32 %v921, 7
    %v923 = vsub.s32 %v920, %v922
    %v924 = vrot.slane %v902, %v923
    %v926 = vunpack.c.l.s4 1966171168
    %v927 = vunpack.c.0.s8 %v926
    %v928 = vlaneseq
    %v929 = vshrl.u32 %v928, 7
    %v930 = vsub.s32 %v927, %v929
    %v931 = vrot.slane %v903, %v930
    %v932 = vcombine.low %v910, %v917
    %v933 = vcombine.low %v924, %v931
    %v935 = vunpack.c.l.s4 1966171168
    %v936 = vunpack.c.0.s8 %v935
    %v937 = vlaneseq
    %v938 = vshrl.u32 %v937, 7
    %v939 = vsub.s32 %v936, %v938
    %v940 = vrot.slane %v932, %v939
    %v942 = vunpack.c.l.s4 1966171168
    %v943 = vunpack.c.0.s8 %v942
    %v944 = vlaneseq
    %v945 = vshrl.u32 %v944, 7
    %v946 = vsub.s32 %v943, %v945
    %v947 = vrot.slane %v933, %v946
    %v948 = vcombine.low %v940, %v947
    %vm965 = vcmask 130048
    %v966 = vsel %vm965, %v213, -inf
    %967 = vmax.xlane.f32.xlu0 %v966
    %v968 = vpop.xlane.xlu0 %967
    %v969 = vsel %vm965, %v262, -inf
    %970 = vmax.xlane.f32.xlu0 %v969
    %v971 = vpop.xlane.xlu0 %970
    %v972 = vsel %vm965, %v311, -inf
    %973 = vmax.xlane.f32.xlu0 %v972
    %v974 = vpop.xlane.xlu0 %973
    %v975 = vsel %vm965, %v360, -inf
    %976 = vmax.xlane.f32.xlu0 %v975
    %v977 = vpop.xlane.xlu0 %976
    %v978 = vsel %vm965, %v409, -inf
    %979 = vmax.xlane.f32.xlu0 %v978
    %v980 = vpop.xlane.xlu0 %979
    %v981 = vsel %vm965, %v458, -inf
    %982 = vmax.xlane.f32.xlu0 %v981
    %v983 = vpop.xlane.xlu0 %982
    %v984 = vsel %vm965, %v507, -inf
    %985 = vmax.xlane.f32.xlu0 %v984
    %v986 = vpop.xlane.xlu0 %985
    %v987 = vsel %vm965, %v556, -inf
    %988 = vmax.xlane.f32.xlu0 %v987
    %v989 = vpop.xlane.xlu0 %988
    %v990 = vsel %vm965, %v605, -inf
    %991 = vmax.xlane.f32.xlu0 %v990
    %v992 = vpop.xlane.xlu0 %991
    %v993 = vsel %vm965, %v654, -inf
    %994 = vmax.xlane.f32.xlu0 %v993
    %v995 = vpop.xlane.xlu0 %994
    %v996 = vsel %vm965, %v703, -inf
    %997 = vmax.xlane.f32.xlu0 %v996
    %v998 = vpop.xlane.xlu0 %997
    %v999 = vsel %vm965, %v752, -inf
    %1000 = vmax.xlane.f32.xlu0 %v999
    %v1001 = vpop.xlane.xlu0 %1000
    %v1002 = vsel %vm965, %v801, -inf
    %1003 = vmax.xlane.f32.xlu0 %v1002
    %v1004 = vpop.xlane.xlu0 %1003
    %v1005 = vsel %vm965, %v850, -inf
    %1006 = vmax.xlane.f32.xlu0 %v1005
    %v1007 = vpop.xlane.xlu0 %1006
    %v1008 = vsel %vm965, %v899, -inf
    %1009 = vmax.xlane.f32.xlu0 %v1008
    %v1010 = vpop.xlane.xlu0 %1009
    %v1011 = vsel %vm965, %v948, -inf
    %1012 = vmax.xlane.f32.xlu0 %v1011
    %v1013 = vpop.xlane.xlu0 %1012
    %v1030 = vlaneseq
    %v1031 = vand.u32 %v1030, 127
    %v1032 = vlaneseq
    %v1033 = vshrl.u32 %v1032, 7
    %v1034 = vsub.s32 %v1031, %v1033
    %v1035 = vrot.slane %v968, %v1034
    %v1036 = vadd.s32 %v1031, 4294967288
    %v1037 = vlaneseq
    %v1038 = vshrl.u32 %v1037, 7
    %v1039 = vsub.s32 %v1036, %v1038
    %v1040 = vrot.slane %v971, %v1039
    %vm1041 = vcmask 130112
    %v1042 = vsel %vm1041, %v1040, %v1035
    %v1043 = vadd.s32 %v1031, 4294967280
    %v1044 = vlaneseq
    %v1045 = vshrl.u32 %v1044, 7
    %v1046 = vsub.s32 %v1043, %v1045
    %v1047 = vrot.slane %v974, %v1046
    %vm1048 = vcmask 195712
    %v1049 = vsel %vm1048, %v1047, %v1042
    %v1050 = vadd.s32 %v1031, 4294967272
    %v1051 = vlaneseq
    %v1052 = vshrl.u32 %v1051, 7
    %v1053 = vsub.s32 %v1050, %v1052
    %v1054 = vrot.slane %v977, %v1053
    %vm1055 = vcmask 261312
    %v1056 = vsel %vm1055, %v1054, %v1049
    %v1057 = vadd.s32 %v1031, 4294967264
    %v1058 = vlaneseq
    %v1059 = vshrl.u32 %v1058, 7
    %v1060 = vsub.s32 %v1057, %v1059
    %v1061 = vrot.slane %v980, %v1060
    %vm1062 = vcmask 326912
    %v1063 = vsel %vm1062, %v1061, %v1056
    %v1064 = vadd.s32 %v1031, 4294967256
    %v1065 = vlaneseq
    %v1066 = vshrl.u32 %v1065, 7
    %v1067 = vsub.s32 %v1064, %v1066
    %v1068 = vrot.slane %v983, %v1067
    %vm1069 = vcmask 392512
    %v1070 = vsel %vm1069, %v1068, %v1063
    %v1071 = vadd.s32 %v1031, 4294967248
    %v1072 = vlaneseq
    %v1073 = vshrl.u32 %v1072, 7
    %v1074 = vsub.s32 %v1071, %v1073
    %v1075 = vrot.slane %v986, %v1074
    %vm1076 = vcmask 458112
    %v1077 = vsel %vm1076, %v1075, %v1070
    %v1078 = vadd.s32 %v1031, 4294967240
    %v1079 = vlaneseq
    %v1080 = vshrl.u32 %v1079, 7
    %v1081 = vsub.s32 %v1078, %v1080
    %v1082 = vrot.slane %v989, %v1081
    %vm1083 = vcmask 523712
    %v1084 = vsel %vm1083, %v1082, %v1077
    %v1085 = vadd.s32 %v1031, 4294967232
    %v1086 = vlaneseq
    %v1087 = vshrl.u32 %v1086, 7
    %v1088 = vsub.s32 %v1085, %v1087
    %v1089 = vrot.slane %v992, %v1088
    %vm1090 = vcmask 589312
    %v1091 = vsel %vm1090, %v1089, %v1084
    %v1092 = vadd.s32 %v1031, 4294967224
    %v1093 = vlaneseq
    %v1094 = vshrl.u32 %v1093, 7
    %v1095 = vsub.s32 %v1092, %v1094
    %v1096 = vrot.slane %v995, %v1095
    %vm1097 = vcmask 654912
    %v1098 = vsel %vm1097, %v1096, %v1091
    %v1099 = vadd.s32 %v1031, 4294967216
    %v1100 = vlaneseq
    %v1101 = vshrl.u32 %v1100, 7
    %v1102 = vsub.s32 %v1099, %v1101
    %v1103 = vrot.slane %v998, %v1102
    %vm1104 = vcmask 720512
    %v1105 = vsel %vm1104, %v1103, %v1098
    %v1106 = vadd.s32 %v1031, 4294967208
    %v1107 = vlaneseq
    %v1108 = vshrl.u32 %v1107, 7
    %v1109 = vsub.s32 %v1106, %v1108
    %v1110 = vrot.slane %v1001, %v1109
    %vm1111 = vcmask 786112
    %v1112 = vsel %vm1111, %v1110, %v1105
    %v1113 = vadd.s32 %v1031, 4294967200
    %v1114 = vlaneseq
    %v1115 = vshrl.u32 %v1114, 7
    %v1116 = vsub.s32 %v1113, %v1115
    %v1117 = vrot.slane %v1004, %v1116
    %vm1118 = vcmask 851712
    %v1119 = vsel %vm1118, %v1117, %v1112
    %v1120 = vadd.s32 %v1031, 4294967192
    %v1121 = vlaneseq
    %v1122 = vshrl.u32 %v1121, 7
    %v1123 = vsub.s32 %v1120, %v1122
    %v1124 = vrot.slane %v1007, %v1123
    %vm1125 = vcmask 917312
    %v1126 = vsel %vm1125, %v1124, %v1119
    %v1127 = vadd.s32 %v1031, 4294967184
    %v1128 = vlaneseq
    %v1129 = vshrl.u32 %v1128, 7
    %v1130 = vsub.s32 %v1127, %v1129
    %v1131 = vrot.slane %v1010, %v1130
    %vm1132 = vcmask 982912
    %v1133 = vsel %vm1132, %v1131, %v1126
    %v1134 = vadd.s32 %v1031, 4294967176
    %v1135 = vlaneseq
    %v1136 = vshrl.u32 %v1135, 7
    %v1137 = vsub.s32 %v1134, %v1136
    %v1138 = vrot.slane %v1013, %v1137
    %vm1139 = vcmask 1048512
    %v1140 = vsel %vm1139, %v1138, %v1133
    %1142 = vst [vmem:[#allocation5] sm:$0x1] %v1140
    // Predicated region
    $region10: #{tpu_custom_call.1} parent=1 // pred_check
      _
    $region11: #{tpu_custom_call.1} parent=1 // pred_check_branch
      %1144 = sbr.rel (0) target = $region13
    $region12: #{tpu_custom_call.1} parent=1 // pred_region
      %s1146 = ssub.s32 16, 16
      %1147 = vsyncadd [#allocation4], %s1146
      %s1149 = sshll.u32 [#allocation5], 4
      %s1150 = int_to_ptr.vmem [resolvable:$true] %s1149
      %1152 = dma.vmem_to_hbm [thread:$0]  %s1150, 16, %s1, [#allocation4]
    $region13: #{tpu_custom_call.1} parent=1 // pred_fallthru
      _
    // Predicated region
    $region14: #{tpu_custom_call.1} parent=1 // pred_check
      _
    $region15: #{tpu_custom_call.1} parent=1 // pred_check_branch
      %1154 = sbr.rel (0) target = $region17
    $region16: #{tpu_custom_call.1} parent=1 // pred_region
      %1155 = dma.done [#allocation4], 16
    $region17: #{tpu_custom_call.1} parent=1 // pred_fallthru
      _
    %1156 = vsyncpa [#allocation3], 1
    %1157 = vsyncpa [#allocation4], 1

</llo_original>
